<compile_context>
chip_gen: v5e
topology: v5e:2x2
jax: 0.10.0
libtpu: 0.0.40
codegen_flags: <defaults>
</compile_context>

<pallas_src>
import functools

import jax
import jax.numpy as jnp
from jax.experimental import pallas as pl
from jax.experimental.pallas import tpu as pltpu

_LANE = 128


def _projection_kernel(x_ref, w1_ref, b1_ref, w2_ref, b2_ref, o_ref):
    """One (Cin, THW) pixel tile of: W2 @ softplus(W1 @ x + b1) + b2.

    Channels sit on sublanes, pixels on lanes -> lane-dense loads/stores and
    MXU contractions over the small channel dims.
    """
    x = x_ref[...]                                             # (Cin, THW), native dtype
    h = jnp.dot(w1_ref[...], x, preferred_element_type=jnp.float32)
    h = h + b1_ref[...]                                        # (Chid, THW) f32

    # Softplus with PyTorch semantics (threshold=20): identity above 20,
    # log1p(exp(h)) otherwise; exp argument clamped for numerical safety.
    sp = jnp.log1p(jnp.exp(jnp.minimum(h, 20.0)))
    h = jnp.where(h > 20.0, h, sp)

    # fc2: feed the MXU in the weight dtype (bf16 weights -> bf16 operand),
    # keep f32 accumulation.
    o = jnp.dot(w2_ref[...], h.astype(w2_ref.dtype),
                preferred_element_type=jnp.float32)
    o_ref[...] = (o + b2_ref[...]).astype(o_ref.dtype)


@functools.partial(jax.jit, static_argnames=("t_hw",))
def projection_forward(x_nchw, w1, b1, w2, b2, *, t_hw=2048):
    """Forward pass of Projection, NCHW-native.

    Args:
      x_nchw: (N, Cin, H, W) input, like the PyTorch module.
      w1: (Chid, Cin)  -- squeezed Conv2d(Cin, Chid, 1) weight (PyTorch layout).
      b1: (Chid,)
      w2: (Cout, Chid) -- squeezed Conv2d(Chid, Cout, 1) weight.
      b2: (Cout,)
    Returns:
      (N, Cout, H, W) output matching nn.Conv2d NCHW semantics.
    """
    N, Cin, H, W = x_nchw.shape
    Chid = w1.shape[0]
    Cout = w2.shape[0]
    HW = H * W

    # Pixel tile on the lane axis: a multiple of 128 for lane-dense DMA/stores,
    # large (default 2048) to amortize per-grid-step overhead.
    t = max(_LANE, (min(t_hw, pl.cdiv(HW, _LANE) * _LANE) // _LANE) * _LANE)
    hw_pad = pl.cdiv(HW, t) * t
    # v7x has 2 TensorCores: prefer >=2 grid programs so "parallel" axes shard.
    while N * (hw_pad // t) < 2 and t > _LANE:
        t = max(_LANE, (t // 2 // _LANE) * _LANE)
        hw_pad = pl.cdiv(HW, t) * t

    x3d = x_nchw.reshape(N, Cin, HW)        # free: H*W is already contiguous
    if hw_pad != HW:
        x3d = jnp.pad(x3d, ((0, 0), (0, 0), (0, hw_pad - HW)))

    b1_col = b1.reshape(Chid, 1).astype(jnp.float32)
    b2_col = b2.reshape(Cout, 1).astype(jnp.float32)

    grid = (N, hw_pad // t)

    # Rough VMEM budget: double-buffered in/out pixel tiles + resident weights
    # + f32 intermediates.  Only raise the scoped limit when the default would
    # be tight; cap at 64 MiB so the same choice is valid on v7x.
    itemsize = x_nchw.dtype.itemsize
    est = (2 * (Cin + Cout) * t * itemsize          # double-buffered x / out tiles
           + 2 * Chid * t * 4                       # f32 intermediate + temps
           + 2 * (Chid * Cin + Cout * Chid) * w1.dtype.itemsize
           + 2 * (Chid + Cout) * 4
           + (1 << 20))
    cp_kwargs = dict(dimension_semantics=("parallel", "parallel"))
    if est > (24 << 20):
        cp_kwargs["vmem_limit_bytes"] = int(min(2 * est, 64 << 20))

    out3d = pl.pallas_call(
        _projection_kernel,
        out_shape=jax.ShapeDtypeStruct((N, Cout, hw_pad), x_nchw.dtype),
        grid_spec=pltpu.PrefetchScalarGridSpec(
            num_scalar_prefetch=0,
            grid=grid,
            in_specs=[
                # x: one batch element (squeezed), full channels, pixel tile.
                pl.BlockSpec((None, Cin, t), lambda n, j: (n, 0, j)),
                # weights / biases: whole arrays, resident for every tile.
                pl.BlockSpec((Chid, Cin), lambda n, j: (0, 0)),
                pl.BlockSpec((Chid, 1), lambda n, j: (0, 0)),
                pl.BlockSpec((Cout, Chid), lambda n, j: (0, 0)),
                pl.BlockSpec((Cout, 1), lambda n, j: (0, 0)),
            ],
            out_specs=pl.BlockSpec((None, Cout, t), lambda n, j: (n, 0, j)),
        ),
        compiler_params=pltpu.CompilerParams(**cp_kwargs),
    )(x3d, w1, b1_col, w2, b2_col)

    if hw_pad != HW:
        out3d = out3d[:, :, :HW]
    return out3d.reshape(N, Cout, H, W)


def _reference_forward(x_nchw, w1, b1, w2, b2):
    """Pure-JAX reference (same math, no Pallas) for a sanity check."""
    N, Cin, H, W = x_nchw.shape
    x = x_nchw.reshape(N, Cin, H * W).astype(jnp.float32)
    h = jnp.einsum("oc,ncp->nop", w1.astype(jnp.float32), x)
    h = h + b1.astype(jnp.float32)[None, :, None]
    h = jnp.where(h > 20.0, h, jnp.log1p(jnp.exp(jnp.minimum(h, 20.0))))
    o = jnp.einsum("oc,ncp->nop", w2.astype(jnp.float32), h)
    o = o + b2.astype(jnp.float32)[None, :, None]
    return o.reshape(N, w2.shape[0], H, W).astype(x_nchw.dtype)


if __name__ == "__main__":
    # Small deterministic problem: batch=2, in_channels=4, hidden=32,
    # out_channels=4, spatial 16x16.
    N, Cin, Chid, Cout, H, W = 2, 4, 32, 4, 16, 16

    key = jax.random.PRNGKey(0)
    kx, kw1, kb1, kw2, kb2 = jax.random.split(key, 5)

    x = jax.random.normal(kx, (N, Cin, H, W), dtype=jnp.float32)

    # Deterministic init mimicking nn.Conv2d's uniform fan-in scaling; weights
    # are stored in the natural PyTorch (out_channels, in_channels) layout.
    s1 = 1.0 / jnp.sqrt(jnp.float32(Cin))
    s2 = 1.0 / jnp.sqrt(jnp.float32(Chid))
    w1 = jax.random.uniform(kw1, (Chid, Cin), jnp.float32, -s1, s1)
    b1 = jax.random.uniform(kb1, (Chid,), jnp.float32, -s1, s1)
    w2 = jax.random.uniform(kw2, (Cout, Chid), jnp.float32, -s2, s2)
    b2 = jax.random.uniform(kb2, (Cout,), jnp.float32, -s2, s2)

    out = jax.block_until_ready(projection_forward(x, w1, b1, w2, b2))
    ref = _reference_forward(x, w1, b1, w2, b2)
    assert out.shape == (N, Cout, H, W), out.shape
    assert jnp.allclose(out, ref, atol=1e-5, rtol=1e-5), "mismatch vs reference"

    # Ragged spatial extent (forces lane padding inside the wrapper).
    x2 = jax.random.normal(kx, (1, Cin, 7, 9), dtype=jnp.float32)
    out2 = jax.block_until_ready(projection_forward(x2, w1, b1, w2, b2))
    ref2 = _reference_forward(x2, w1, b1, w2, b2)
    assert out2.shape == (1, Cout, 7, 9), out2.shape
    assert jnp.allclose(out2, ref2, atol=1e-5, rtol=1e-5), "mismatch (padded case)"

    print("KERNEL_OK")
</pallas_src>

<mosaic_0001>
module attributes {stable_mosaic.version = 11 : i64} {
  func.func @_projection_kernel(%arg0: i32, %arg1: i32, %arg2: memref<1x4x256xf32, #tpu.memory_space<vmem>>, %arg3: memref<32x4xf32, #tpu.memory_space<vmem>>, %arg4: memref<32x1xf32, #tpu.memory_space<vmem>>, %arg5: memref<4x32xf32, #tpu.memory_space<vmem>>, %arg6: memref<4x1xf32, #tpu.memory_space<vmem>>, %arg7: memref<1x4x256xf32, #tpu.memory_space<vmem>>) attributes {dimension_semantics = [#tpu.dimension_semantics<parallel>, #tpu.dimension_semantics<parallel>], iteration_bounds = array<i64: 2, 1>, scalar_prefetch = 0 : i64, scratch_operands = 0 : i64, tpu.core_type = #tpu.core_type<tc>, window_params = [{transform_indices = @transform_0, window_bounds = array<i64: 1, 4, 256>}, {pipeline_mode = #tpu.pipeline_mode<synchronous>, transform_indices = @transform_1, window_bounds = array<i64: 32, 4>}, {pipeline_mode = #tpu.pipeline_mode<synchronous>, transform_indices = @transform_2, window_bounds = array<i64: 32, 1>}, {pipeline_mode = #tpu.pipeline_mode<synchronous>, transform_indices = @transform_3, window_bounds = array<i64: 4, 32>}, {pipeline_mode = #tpu.pipeline_mode<synchronous>, transform_indices = @transform_4, window_bounds = array<i64: 4, 1>}, {transform_indices = @transform_5, window_bounds = array<i64: 1, 4, 256>}]} {
    %c0 = arith.constant 0 : index
    %c0_0 = arith.constant 0 : index
    %c0_1 = arith.constant 0 : index
    %0 = vector.load %arg2[%c0, %c0_0, %c0_1] : memref<1x4x256xf32, #tpu.memory_space<vmem>>, vector<1x4x256xf32>
    %1 = vector.shape_cast %0 : vector<1x4x256xf32> to vector<4x256xf32>
    %c0_2 = arith.constant 0 : index
    %c0_3 = arith.constant 0 : index
    %2 = vector.load %arg3[%c0_2, %c0_3] : memref<32x4xf32, #tpu.memory_space<vmem>>, vector<32x4xf32>
    %cst = arith.constant dense<0.000000e+00> : vector<32x256xf32>
    %3 = tpu.matmul %2, %1, %cst {dimension_numbers = #tpu.dot_dimension_numbers<[1], [0], [0], [1], [0, 0, 1, 1], [], []>} : vector<32x4xf32>, vector<4x256xf32>, vector<32x256xf32> -> vector<32x256xf32>
    %c0_4 = arith.constant 0 : index
    %c0_5 = arith.constant 0 : index
    %4 = vector.load %arg4[%c0_4, %c0_5] : memref<32x1xf32, #tpu.memory_space<vmem>>, vector<32x1xf32>
    %5 = vector.broadcast %4 : vector<32x1xf32> to vector<32x256xf32>
    %6 = arith.addf %3, %5 : vector<32x256xf32>
    %cst_6 = arith.constant 2.000000e+01 : f32
    %7 = vector.broadcast %cst_6 : f32 to vector<32x256xf32>
    %8 = arith.minimumf %6, %7 : vector<32x256xf32>
    %9 = math.exp %8 : vector<32x256xf32>
    %10 = math.log1p %9 : vector<32x256xf32>
    %cst_7 = arith.constant 2.000000e+01 : f32
    %11 = vector.broadcast %cst_7 : f32 to vector<32x256xf32>
    %12 = arith.cmpf ogt, %6, %11 : vector<32x256xf32>
    %13 = arith.select %12, %6, %10 : vector<32x256xi1>, vector<32x256xf32>
    %c0_8 = arith.constant 0 : index
    %c0_9 = arith.constant 0 : index
    %14 = vector.load %arg5[%c0_8, %c0_9] : memref<4x32xf32, #tpu.memory_space<vmem>>, vector<4x32xf32>
    %cst_10 = arith.constant dense<0.000000e+00> : vector<4x256xf32>
    %15 = tpu.matmul %14, %13, %cst_10 {dimension_numbers = #tpu.dot_dimension_numbers<[1], [0], [0], [1], [0, 0, 1, 1], [], []>} : vector<4x32xf32>, vector<32x256xf32>, vector<4x256xf32> -> vector<4x256xf32>
    %c0_11 = arith.constant 0 : index
    %c0_12 = arith.constant 0 : index
    %16 = vector.load %arg6[%c0_11, %c0_12] : memref<4x1xf32, #tpu.memory_space<vmem>>, vector<4x1xf32>
    %17 = vector.broadcast %16 : vector<4x1xf32> to vector<4x256xf32>
    %18 = arith.addf %15, %17 : vector<4x256xf32>
    %c0_13 = arith.constant 0 : index
    %c0_14 = arith.constant 0 : index
    %c0_15 = arith.constant 0 : index
    %19 = vector.load %arg7[%c0_13, %c0_14, %c0_15] : memref<1x4x256xf32, #tpu.memory_space<vmem>>, vector<1x4x256xf32>
    %20 = vector.shape_cast %19 : vector<1x4x256xf32> to vector<4x256xf32>
    %21 = vector.shape_cast %18 : vector<4x256xf32> to vector<1x4x256xf32>
    tpu.vector_store %arg7[%c0_13, %c0_14, %c0_15], %21 {strides = array<i32>} : memref<1x4x256xf32, #tpu.memory_space<vmem>>, vector<1x4x256xf32>,
    return
  }
  func.func @transform_0(%arg0: i32, %arg1: i32) -> (i32, i32, i32) {
    %c0_i32 = arith.constant 0 : i32
    %c0_i32_0 = arith.constant 0 : i32
    return %arg0, %c0_i32, %arg1 : i32, i32, i32
  }
  func.func @transform_1(%arg0: i32, %arg1: i32) -> (i32, i32) {
    %c0_i32 = arith.constant 0 : i32
    %c0_i32_0 = arith.constant 0 : i32
    %c0_i32_1 = arith.constant 0 : i32
    return %c0_i32, %c0_i32_0 : i32, i32
  }
  func.func @transform_2(%arg0: i32, %arg1: i32) -> (i32, i32) {
    %c0_i32 = arith.constant 0 : i32
    %c0_i32_0 = arith.constant 0 : i32
    %c0_i32_1 = arith.constant 0 : i32
    return %c0_i32, %c0_i32_0 : i32, i32
  }
  func.func @transform_3(%arg0: i32, %arg1: i32) -> (i32, i32) {
    %c0_i32 = arith.constant 0 : i32
    %c0_i32_0 = arith.constant 0 : i32
    %c0_i32_1 = arith.constant 0 : i32
    return %c0_i32, %c0_i32_0 : i32, i32
  }
  func.func @transform_4(%arg0: i32, %arg1: i32) -> (i32, i32) {
    %c0_i32 = arith.constant 0 : i32
    %c0_i32_0 = arith.constant 0 : i32
    %c0_i32_1 = arith.constant 0 : i32
    return %c0_i32, %c0_i32_0 : i32, i32
  }
  func.func @transform_5(%arg0: i32, %arg1: i32) -> (i32, i32, i32) {
    %c0_i32 = arith.constant 0 : i32
    %c0_i32_0 = arith.constant 0 : i32
    return %arg0, %c0_i32, %arg1 : i32, i32, i32
  }
}

</mosaic_0001>

<llo_original>
// kernel: projection_forward.1
$region0: #{projection_forward.1}
  #allocation0 [shape = 'u32[]', space=smem, size = 0x4, offset = 0x4, fixed_abs, tag = 'smem constant byte address 0x4 - core index']
  #allocation1 [shape = 'u32[72,128]{1,0:T(1,128)}', space=vmem, size = 0x9000, scoped, tag = 'internal scratch']
  %s0 = inlined_call_operand.vmem [shape: f32[2,4,256], index: 0, kind: input, shape index: {}]
  %s1 = inlined_call_operand.vmem [shape: f32[32,4], index: 1, kind: input, shape index: {}]
  %s2 = inlined_call_operand.vmem [shape: f32[32,1], index: 2, kind: input, shape index: {}]
  %s3 = inlined_call_operand.vmem [shape: f32[4,32], index: 3, kind: input, shape index: {}]
  %s4 = inlined_call_operand.vmem [shape: f32[4,1], index: 4, kind: input, shape index: {}]
  %s5 = inlined_call_operand.vmem [shape: f32[2,4,256], index: 5, kind: output, shape index: {}]
  %s6 = sld [smem:[#allocation0]]
  $region53: #{projection_forward.1} parent=0
    _
  %s8 = ssub.s32 1, %s6
  %s9 = scalar_select 0, %s8, %s6
  loop: start=0, step=1, limit=4
  $region2: #{projection_forward.1} parent=0 // loop_pre_header
    _
  $region3: #{projection_forward.1} parent=0 // loop_header
    %s11 = sphi 0, %s15
    %p12 = scmp.ge.s32.totalorder %s11, 4
    %s18 = sphi 0, %s30
    %s19 = sphi 0, %s26
    %s20 = sphi 0, %s18
    %s21 = sphi 0, %s19
    %s22 = sphi 0, %s20
    %s23 = sphi 0, %s21
    %s35 = sphi 0, %s37
    %s38 = sphi 0, %s35
    %s39 = sphi 0, %s38
    %s55 = sphi 0, %s39
    %s59 = sphi 0, %s59
    %s61 = sphi 0, %s59
    %s62 = sphi 0, %s61
    %s76 = sphi 0, %s62
    %s80 = sphi 0, %s80
    %s82 = sphi 0, %s80
    %s83 = sphi 0, %s82
    %s97 = sphi 0, %s83
    %s101 = sphi 0, %s101
    %s103 = sphi 0, %s101
    %s104 = sphi 0, %s103
    %s118 = sphi 0, %s104
    %s122 = sphi 0, %s122
    %s124 = sphi 0, %s122
    %s125 = sphi 0, %s124
    %s139 = sphi 0, %s125
    %s147 = sphi 0, %s149
    %s150 = sphi 0, %s147
    %s151 = sphi 0, %s150
    %s167 = sphi 0, %s151
  $region4: #{projection_forward.1} parent=0 // loop_header_branch
    %14 = sbr.rel (%p12) target = $region8
  $region5: #{projection_forward.1} parent=0 // loop_body
    %s16 = ssub.s32 %s11, 1
    %s17 = ssub.s32 %s11, 2
    %s24 = sadd.s32 1, %s19
    %p25 = scmp.ge.s32.totalorder %s24, 1
    %s26 = scalar_select %p25, 0, %s24
    %s27 = sadd.s32 1, %s18
    %s28 = scalar_select %p25, %s27, %s18
    %p29 = scmp.ge.s32.totalorder %s28, 2
    %s30 = scalar_select %p29, 0, %s28
    %s31 = ssub.s32 %s18, %s30
    %s32 = ssub.s32 %s19, %s26
    %s33 = sor.u32 %s31, %s32
    %p34 = scmp.eq.s32.totalorder %s33, 0
    %s36 = sadd.s32 %s35, 1
    %s37 = scalar_select %p34, %s35, %s36
    %p40 = pneg %p34
    %p41 = scmp.eq.s32.totalorder %s11, 1
    %p42 = por %p40, %p41
    %p43 = scmp.ne.s32.totalorder %s35, %s38
    %p44 = scmp.eq.s32.totalorder %s11, 0
    %p45 = por %p43, %p44
    %p46 = scmp.ne.s32.totalorder %s35, %s38
    %p47 = scmp.eq.s32.totalorder %s16, 1
    %p48 = por %p46, %p47
    %p49 = scmp.ne.s32.totalorder %s38, %s39
    %p50 = scmp.eq.s32.totalorder %s16, 0
    %p51 = por %p49, %p50
    %p52 = scmp.ne.s32.totalorder %s38, %s39
    %p53 = scmp.eq.s32.totalorder %s17, 1
    %p54 = por %p52, %p53
    %p56 = scmp.ne.s32.totalorder %s39, %s55
    %p57 = scmp.eq.s32.totalorder %s17, 0
    %p58 = por %p56, %p57
    %s60 = sadd.s32 %s59, 1
    %p63 = scmp.eq.s32.totalorder %s11, 1
    %p64 = scmp.ne.s32.totalorder %s59, %s61
    %p65 = scmp.eq.s32.totalorder %s11, 0
    %p66 = por %p64, %p65
    %p67 = scmp.ne.s32.totalorder %s59, %s61
    %p68 = scmp.eq.s32.totalorder %s16, 1
    %p69 = por %p67, %p68
    %p70 = scmp.ne.s32.totalorder %s61, %s62
    %p71 = scmp.eq.s32.totalorder %s16, 0
    %p72 = por %p70, %p71
    %p73 = scmp.ne.s32.totalorder %s61, %s62
    %p74 = scmp.eq.s32.totalorder %s17, 1
    %p75 = por %p73, %p74
    %p77 = scmp.ne.s32.totalorder %s62, %s76
    %p78 = scmp.eq.s32.totalorder %s17, 0
    %p79 = por %p77, %p78
    %s81 = sadd.s32 %s80, 1
    %p84 = scmp.eq.s32.totalorder %s11, 1
    %p85 = scmp.ne.s32.totalorder %s80, %s82
    %p86 = scmp.eq.s32.totalorder %s11, 0
    %p87 = por %p85, %p86
    %p88 = scmp.ne.s32.totalorder %s80, %s82
    %p89 = scmp.eq.s32.totalorder %s16, 1
    %p90 = por %p88, %p89
    %p91 = scmp.ne.s32.totalorder %s82, %s83
    %p92 = scmp.eq.s32.totalorder %s16, 0
    %p93 = por %p91, %p92
    %p94 = scmp.ne.s32.totalorder %s82, %s83
    %p95 = scmp.eq.s32.totalorder %s17, 1
    %p96 = por %p94, %p95
    %p98 = scmp.ne.s32.totalorder %s83, %s97
    %p99 = scmp.eq.s32.totalorder %s17, 0
    %p100 = por %p98, %p99
    %s102 = sadd.s32 %s101, 1
    %p105 = scmp.eq.s32.totalorder %s11, 1
    %p106 = scmp.ne.s32.totalorder %s101, %s103
    %p107 = scmp.eq.s32.totalorder %s11, 0
    %p108 = por %p106, %p107
    %p109 = scmp.ne.s32.totalorder %s101, %s103
    %p110 = scmp.eq.s32.totalorder %s16, 1
    %p111 = por %p109, %p110
    %p112 = scmp.ne.s32.totalorder %s103, %s104
    %p113 = scmp.eq.s32.totalorder %s16, 0
    %p114 = por %p112, %p113
    %p115 = scmp.ne.s32.totalorder %s103, %s104
    %p116 = scmp.eq.s32.totalorder %s17, 1
    %p117 = por %p115, %p116
    %p119 = scmp.ne.s32.totalorder %s104, %s118
    %p120 = scmp.eq.s32.totalorder %s17, 0
    %p121 = por %p119, %p120
    %s123 = sadd.s32 %s122, 1
    %p126 = scmp.eq.s32.totalorder %s11, 1
    %p127 = scmp.ne.s32.totalorder %s122, %s124
    %p128 = scmp.eq.s32.totalorder %s11, 0
    %p129 = por %p127, %p128
    %p130 = scmp.ne.s32.totalorder %s122, %s124
    %p131 = scmp.eq.s32.totalorder %s16, 1
    %p132 = por %p130, %p131
    %p133 = scmp.ne.s32.totalorder %s124, %s125
    %p134 = scmp.eq.s32.totalorder %s16, 0
    %p135 = por %p133, %p134
    %p136 = scmp.ne.s32.totalorder %s124, %s125
    %p137 = scmp.eq.s32.totalorder %s17, 1
    %p138 = por %p136, %p137
    %p140 = scmp.ne.s32.totalorder %s125, %s139
    %p141 = scmp.eq.s32.totalorder %s17, 0
    %p142 = por %p140, %p141
    %s143 = ssub.s32 %s18, %s30
    %s144 = ssub.s32 %s19, %s26
    %s145 = sor.u32 %s143, %s144
    %p146 = scmp.eq.s32.totalorder %s145, 0
    %s148 = sadd.s32 %s147, 1
    %s149 = scalar_select %p146, %s147, %s148
    %p152 = pneg %p146
    %p153 = scmp.eq.s32.totalorder %s11, 1
    %p154 = por %p152, %p153
    %p155 = scmp.ne.s32.totalorder %s147, %s150
    %p156 = scmp.eq.s32.totalorder %s11, 0
    %p157 = por %p155, %p156
    %p158 = scmp.ne.s32.totalorder %s147, %s150
    %p159 = scmp.eq.s32.totalorder %s16, 1
    %p160 = por %p158, %p159
    %p161 = scmp.ne.s32.totalorder %s150, %s151
    %p162 = scmp.eq.s32.totalorder %s16, 0
    %p163 = por %p161, %p162
    %p164 = scmp.ne.s32.totalorder %s150, %s151
    %p165 = scmp.eq.s32.totalorder %s17, 1
    %p166 = por %p164, %p165
    %p168 = scmp.ne.s32.totalorder %s151, %s167
    %p169 = scmp.eq.s32.totalorder %s17, 0
    %p170 = por %p168, %p169
    %p171 = scmp.le.s32.totalorder 1, %s11
    %p172 = scmp.lt.s32.totalorder %s11, 3
    %p173 = pnand %p171, %p172
    %p174 = pneg %p173
    // Predicated region
    $region9: #{projection_forward.1} parent=5 // pred_check
      _
    $region10: #{projection_forward.1} parent=5 // pred_check_branch
      %176 = sbr.rel (%p173) target = $region12
    $region11: #{projection_forward.1} parent=5 // pred_region
      %s177 = ssub.s32 %s11, 1
      // Predicated region
      $region13: #{projection_forward.1} parent=11 // pred_check
        %p178 = pneg %p72
      $region14: #{projection_forward.1} parent=11 // pred_check_branch
        %180 = sbr.rel (%p178) target = $region16
      $region15: #{projection_forward.1} parent=11 // pred_region
        _
      $region16: #{projection_forward.1} parent=11 // pred_fallthru
        _
      // Predicated region
      $region17: #{projection_forward.1} parent=11 // pred_check
        %p181 = pneg %p93
      $region18: #{projection_forward.1} parent=11 // pred_check_branch
        %183 = sbr.rel (%p181) target = $region20
      $region19: #{projection_forward.1} parent=11 // pred_region
        _
      $region20: #{projection_forward.1} parent=11 // pred_fallthru
        _
      // Predicated region
      $region21: #{projection_forward.1} parent=11 // pred_check
        %p184 = pneg %p114
      $region22: #{projection_forward.1} parent=11 // pred_check_branch
        %186 = sbr.rel (%p184) target = $region24
      $region23: #{projection_forward.1} parent=11 // pred_region
        _
      $region24: #{projection_forward.1} parent=11 // pred_fallthru
        _
      // Predicated region
      $region25: #{projection_forward.1} parent=11 // pred_check
        %p187 = pneg %p135
      $region26: #{projection_forward.1} parent=11 // pred_check_branch
        %189 = sbr.rel (%p187) target = $region28
      $region27: #{projection_forward.1} parent=11 // pred_region
        _
      $region28: #{projection_forward.1} parent=11 // pred_fallthru
        _
    $region12: #{projection_forward.1} parent=5 // pred_fallthru
      _
    %p190 = scmp.lt.s32.totalorder %s11, 2
    // Predicated region
    $region29: #{projection_forward.1} parent=5 // pred_check
      %p191 = pneg %p190
    $region30: #{projection_forward.1} parent=5 // pred_check_branch
      %193 = sbr.rel (%p191) target = $region32
    $region31: #{projection_forward.1} parent=5 // pred_region
      // Predicated region
      $region33: #{projection_forward.1} parent=31 // pred_check
        %p194 = pneg %p45
      $region34: #{projection_forward.1} parent=31 // pred_check_branch
        %196 = sbr.rel (%p194) target = $region36
      $region35: #{projection_forward.1} parent=31 // pred_region
        %s197 = smul.u32 2, %s19
        %p198 = scmp.lt.s32.totalorder %s18, 1
        %s199 = scalar_select %p198, %s18, 1
        %p200 = scmp.lt.s32.totalorder %s197, 1
        %s201 = scalar_select %p200, %s197, 1
        %s202 = smul.addr %s199, 2
        %s203 = sadd.s32 %s201, %s202
        %s204 = smul.addr %s203, 4
        %s205 = scalar_lea.vmem %s0, %s204
        %s206 = smul.u32 2, %s19
      $region36: #{projection_forward.1} parent=31 // pred_fallthru
        _
    $region32: #{projection_forward.1} parent=5 // pred_fallthru
      _
    %p207 = scmp.le.s32.totalorder 1, %s11
    %p208 = scmp.lt.s32.totalorder %s11, 3
    %p209 = pnand %p207, %p208
    %p210 = pneg %p209
    // Predicated region
    $region37: #{projection_forward.1} parent=5 // pred_check
      _
    $region38: #{projection_forward.1} parent=5 // pred_check_branch
      %212 = sbr.rel (%p209) target = $region40
    $region39: #{projection_forward.1} parent=5 // pred_region
      %s213 = ssub.s32 %s11, 1
      %s214 = smul.u32 2, %s21
      %p215 = scmp.lt.s32.totalorder %s20, 1
      %s216 = scalar_select %p215, %s20, 1
      %p217 = scmp.lt.s32.totalorder %s214, 1
      %s218 = scalar_select %p217, %s214, 1
      %s219 = smul.addr %s216, 2
      %s220 = sadd.s32 %s218, %s219
      %s221 = smul.addr %s220, 4
      %s222 = scalar_lea.vmem %s0, %s221
      %p223 = pneg %p51
      %p224 = pneg %p48
      %p225 = pneg %p72
      %p226 = pneg %p69
      %p227 = pneg %p93
      %p228 = pneg %p90
      %p229 = pneg %p114
      %p230 = pneg %p111
      %p231 = pneg %p135
      %p232 = pneg %p132
      %p233 = pneg %p163
      %p234 = pneg %p160
      %s235 = smul.u32 2, %s21
      %p236 = scmp.lt.s32.totalorder %s20, 1
      %s237 = scalar_select %p236, %s20, 1
      %p238 = scmp.lt.s32.totalorder %s235, 1
      %s239 = scalar_select %p238, %s235, 1
      %s240 = smul.addr %s237, 2
      %s241 = sadd.s32 %s239, %s240
      %s242 = smul.addr %s241, 4
      %s243 = scalar_lea.vmem %s5, %s242
      %s244 = smul.u32 2, %s21
      %p245 = scmp.lt.s32.totalorder %s20, 1
      %s246 = scalar_select %p245, %s20, 1
      %p247 = scmp.lt.s32.totalorder %s244, 1
      %s248 = scalar_select %p247, %s244, 1
      %s249 = smul.addr %s246, 2
      %s250 = sadd.s32 %s248, %s249
      %s251 = smul.addr %s250, 4
      %s252 = scalar_lea.vmem %s0, %s251
      %s253 = smul.u32 2, %s21
      %s254 = smul.u32 2, %s21
      %p255 = scmp.lt.s32.totalorder %s20, 1
      %s256 = scalar_select %p255, %s20, 1
      %p257 = scmp.lt.s32.totalorder %s254, 1
      %s258 = scalar_select %p257, %s254, 1
      %s259 = smul.addr %s256, 2
      %s260 = sadd.s32 %s258, %s259
      %s261 = smul.addr %s260, 4
      %s262 = scalar_lea.vmem %s5, %s261
      %s263 = smul.u32 2, %s21
      %v264 = vld [vmem:[%s252] sm:$0xff]
      %v265 = vld [vmem:[%s1] sm:$0xff]
      %v266 = vld [vmem:[%s1 + $0x8] sm:$0xff]
      %v267 = vld [vmem:[%s1 + $0x10] sm:$0xff]
      %v268 = vld [vmem:[%s1 + $0x18] sm:$0xff]
      %v269 = vld [vmem:[%s2] sm:$0xff]
      %v270 = vld [vmem:[%s2 + $0x8] sm:$0xff]
      %v271 = vld [vmem:[%s2 + $0x10] sm:$0xff]
      %v272 = vld [vmem:[%s2 + $0x18] sm:$0xff]
      %274 = vset.pattern.permute.xlu0 0
      %275 = vperm.xlu0 %274, %v269
      %v276 = vpop.permute.xlu0 %275
      %279 = vset.pattern.permute.xlu0 0
      %280 = vperm.xlu0 %279, %v270
      %v281 = vpop.permute.xlu0 %280
      %284 = vset.pattern.permute.xlu0 0
      %285 = vperm.xlu0 %284, %v271
      %v286 = vpop.permute.xlu0 %285
      %289 = vset.pattern.permute.xlu0 0
      %290 = vperm.xlu0 %289, %v272
      %v291 = vpop.permute.xlu0 %290
      %294 = vst [vmem:[#allocation1] ss:$2 sm:$0xff] %v264
      %v295 = vld.sshfl [vmem:[#allocation1] sm:$0xff pattern:$0x75316420]
      %v296 = vld.sshfl [vmem:[#allocation1 + $0x8] sm:$0xff pattern:$0x75316420]
      %vm297 = vcmask 31744
      %v299 = vsel %vm297, %v265, 0
      %v302 = vsel %vm297, %v266, 0
      %v305 = vsel %vm297, %v267, 0
      %v308 = vsel %vm297, %v268, 0
      %vm310 = vcmask 1043456
      %v311 = vsel %vm310, %v295, 0
      %v313 = vsel %vm310, %v296, 0
      %315 = vmatpush.msra.mxu0 0.0
      %316 = vmatpush.msra.mxu0 0.0
      %317 = vmatpush.msra.mxu0 0.0
      %318 = vmatpush.msra.mxu0 0.0
      %319 = vmatpush.msra.mxu0 0.0
      %320 = vmatpush.msra.mxu0 0.0
      %321 = vmatpush.msra.mxu0 0.0
      %322 = vmatpush.msra.mxu0 0.0
      %323 = vmatpush.msra.mxu0 0.0
      %324 = vmatpush.msra.mxu0 0.0
      %325 = vmatpush.msra.mxu0 0.0
      %326 = vmatpush.msra.mxu0 0.0
      %327 = vmatpush.msra.mxu0 0.0
      %328 = vmatpush.msra.mxu0 0.0
      %329 = vmatpush.msra.mxu0 0.0
      %330 = vmatpush.msra.mxu0 %v311
      %331 = vmatmul.f32.gmra.mxu0 %v299
      %v332 = vpop.f32.mrf.mxu0
      %v333 = vadd.f32 %v276, %v332
      %334 = vmatmul.f32.gmra.mxu0 %v302
      %v335 = vpop.f32.mrf.mxu0
      %v336 = vadd.f32 %v281, %v335
      %337 = vmatmul.f32.gmra.mxu0 %v305
      %v338 = vpop.f32.mrf.mxu0
      %v339 = vadd.f32 %v286, %v338
      %340 = vmatmul.f32.gmra.mxu0 %v308
      %v341 = vpop.f32.mrf.mxu0
      %v342 = vadd.f32 %v291, %v341
      %343 = vdwg.mxu0
      %344 = vmatpush.msra.mxu0 0.0
      %345 = vmatpush.msra.mxu0 0.0
      %346 = vmatpush.msra.mxu0 0.0
      %347 = vmatpush.msra.mxu0 0.0
      %348 = vmatpush.msra.mxu0 0.0
      %349 = vmatpush.msra.mxu0 0.0
      %350 = vmatpush.msra.mxu0 0.0
      %351 = vmatpush.msra.mxu0 0.0
      %352 = vmatpush.msra.mxu0 0.0
      %353 = vmatpush.msra.mxu0 0.0
      %354 = vmatpush.msra.mxu0 0.0
      %355 = vmatpush.msra.mxu0 0.0
      %356 = vmatpush.msra.mxu0 0.0
      %357 = vmatpush.msra.mxu0 0.0
      %358 = vmatpush.msra.mxu0 0.0
      %359 = vmatpush.msra.mxu0 %v313
      %360 = vmatmul.f32.gmra.mxu0 %v299
      %v361 = vpop.f32.mrf.mxu0
      %v362 = vadd.f32 %v276, %v361
      %363 = vmatmul.f32.gmra.mxu0 %v302
      %v364 = vpop.f32.mrf.mxu0
      %v365 = vadd.f32 %v281, %v364
      %366 = vmatmul.f32.gmra.mxu0 %v305
      %v367 = vpop.f32.mrf.mxu0
      %v368 = vadd.f32 %v286, %v367
      %369 = vmatmul.f32.gmra.mxu0 %v308
      %v370 = vpop.f32.mrf.mxu0
      %v371 = vadd.f32 %v291, %v370
      %372 = vdwg.mxu0
      %v373 = vmin.f32 %v333, 20.0
      %v374 = vmin.f32 %v362, 20.0
      %v375 = vmin.f32 %v336, 20.0
      %v376 = vmin.f32 %v365, 20.0
      %v377 = vmin.f32 %v339, 20.0
      %v378 = vmin.f32 %v368, 20.0
      %v379 = vmin.f32 %v342, 20.0
      %v380 = vmin.f32 %v371, 20.0
      %v381 = vmul.f32 %v373, 1.442695
      %v382 = vpow.pop %v381
      %v383 = vmul.f32 %v374, 1.442695
      %v384 = vpow.pop %v383
      %v385 = vmul.f32 %v375, 1.442695
      %v386 = vpow.pop %v385
      %v387 = vmul.f32 %v376, 1.442695
      %v388 = vpow.pop %v387
      %v389 = vmul.f32 %v377, 1.442695
      %v390 = vpow.pop %v389
      %v391 = vmul.f32 %v378, 1.442695
      %v392 = vpow.pop %v391
      %v393 = vmul.f32 %v379, 1.442695
      %v394 = vpow.pop %v393
      %v395 = vmul.f32 %v380, 1.442695
      %v396 = vpow.pop %v395
      %v397 = vadd.f32 %v382, 1.0
      %v398 = vlog2.pop %v397
      %v399 = vmul.f32 %v398, 0.6931472
      %v400 = vmul.f32 -0.5, %v382
      %v401 = vadd.f32 %v400, 1.0
      %v402 = vmul.f32 %v401, %v382
      %v403 = vand.u32 2147483647, %v382
      %vm404 = vcmp.lt.f32.partialorder %v403, 0.0004427343
      %v405 = vsel %vm404, %v402, %v399
      %v406 = vadd.f32 %v384, 1.0
      %v407 = vlog2.pop %v406
      %v408 = vmul.f32 %v407, 0.6931472
      %v409 = vmul.f32 -0.5, %v384
      %v410 = vadd.f32 %v409, 1.0
      %v411 = vmul.f32 %v410, %v384
      %v412 = vand.u32 2147483647, %v384
      %vm413 = vcmp.lt.f32.partialorder %v412, 0.0004427343
      %v414 = vsel %vm413, %v411, %v408
      %v415 = vadd.f32 %v386, 1.0
      %v416 = vlog2.pop %v415
      %v417 = vmul.f32 %v416, 0.6931472
      %v418 = vmul.f32 -0.5, %v386
      %v419 = vadd.f32 %v418, 1.0
      %v420 = vmul.f32 %v419, %v386
      %v421 = vand.u32 2147483647, %v386
      %vm422 = vcmp.lt.f32.partialorder %v421, 0.0004427343
      %v423 = vsel %vm422, %v420, %v417
      %v424 = vadd.f32 %v388, 1.0
      %v425 = vlog2.pop %v424
      %v426 = vmul.f32 %v425, 0.6931472
      %v427 = vmul.f32 -0.5, %v388
      %v428 = vadd.f32 %v427, 1.0
      %v429 = vmul.f32 %v428, %v388
      %v430 = vand.u32 2147483647, %v388
      %vm431 = vcmp.lt.f32.partialorder %v430, 0.0004427343
      %v432 = vsel %vm431, %v429, %v426
      %v433 = vadd.f32 %v390, 1.0
      %v434 = vlog2.pop %v433
      %v435 = vmul.f32 %v434, 0.6931472
      %v436 = vmul.f32 -0.5, %v390
      %v437 = vadd.f32 %v436, 1.0
      %v438 = vmul.f32 %v437, %v390
      %v439 = vand.u32 2147483647, %v390
      %vm440 = vcmp.lt.f32.partialorder %v439, 0.0004427343
      %v441 = vsel %vm440, %v438, %v435
      %v442 = vadd.f32 %v392, 1.0
      %v443 = vlog2.pop %v442
      %v444 = vmul.f32 %v443, 0.6931472
      %v445 = vmul.f32 -0.5, %v392
      %v446 = vadd.f32 %v445, 1.0
      %v447 = vmul.f32 %v446, %v392
      %v448 = vand.u32 2147483647, %v392
      %vm449 = vcmp.lt.f32.partialorder %v448, 0.0004427343
      %v450 = vsel %vm449, %v447, %v444
      %v451 = vadd.f32 %v394, 1.0
      %v452 = vlog2.pop %v451
      %v453 = vmul.f32 %v452, 0.6931472
      %v454 = vmul.f32 -0.5, %v394
      %v455 = vadd.f32 %v454, 1.0
      %v456 = vmul.f32 %v455, %v394
      %v457 = vand.u32 2147483647, %v394
      %vm458 = vcmp.lt.f32.partialorder %v457, 0.0004427343
      %v459 = vsel %vm458, %v456, %v453
      %v460 = vadd.f32 %v396, 1.0
      %v461 = vlog2.pop %v460
      %v462 = vmul.f32 %v461, 0.6931472
      %v463 = vmul.f32 -0.5, %v396
      %v464 = vadd.f32 %v463, 1.0
      %v465 = vmul.f32 %v464, %v396
      %v466 = vand.u32 2147483647, %v396
      %vm467 = vcmp.lt.f32.partialorder %v466, 0.0004427343
      %v468 = vsel %vm467, %v465, %v462
      %vm469 = vcmp.gt.f32.partialorder %v333, 20.0
      %vm470 = vcmp.gt.f32.partialorder %v362, 20.0
      %vm471 = vcmp.gt.f32.partialorder %v336, 20.0
      %vm472 = vcmp.gt.f32.partialorder %v365, 20.0
      %vm473 = vcmp.gt.f32.partialorder %v339, 20.0
      %vm474 = vcmp.gt.f32.partialorder %v368, 20.0
      %vm475 = vcmp.gt.f32.partialorder %v342, 20.0
      %vm476 = vcmp.gt.f32.partialorder %v371, 20.0
      %v477 = vsel %vm469, %v333, %v405
      %v478 = vsel %vm470, %v362, %v414
      %v479 = vsel %vm471, %v336, %v423
      %v480 = vsel %vm472, %v365, %v432
      %v481 = vsel %vm473, %v339, %v441
      %v482 = vsel %vm474, %v368, %v450
      %v483 = vsel %vm475, %v342, %v459
      %v484 = vsel %vm476, %v371, %v468
      %v485 = vld [vmem:[%s3] sm:$0xf]
      %v486 = vld [vmem:[%s4] sm:$0xf]
      %488 = vset.pattern.permute.xlu0 0
      %489 = vperm.xlu0 %488, %v486
      %v490 = vpop.permute.xlu0 %489
      %vm492 = vcmask 261120
      %v494 = vsel %vm492, %v485, 0
      %496 = vmatpush.msra.mxu0 0.0
      %497 = vmatpush.msra.mxu0 0.0
      %498 = vmatpush.msra.mxu0 0.0
      %499 = vmatpush.msra.mxu0 0.0
      %500 = vmatpush.msra.mxu0 0.0
      %501 = vmatpush.msra.mxu0 0.0
      %502 = vmatpush.msra.mxu0 0.0
      %503 = vmatpush.msra.mxu0 0.0
      %504 = vmatpush.msra.mxu0 0.0
      %505 = vmatpush.msra.mxu0 0.0
      %506 = vmatpush.msra.mxu0 0.0
      %507 = vmatpush.msra.mxu0 0.0
      %508 = vmatpush.msra.mxu0 %v483
      %509 = vmatpush.msra.mxu0 %v481
      %510 = vmatpush.msra.mxu0 %v479
      %511 = vmatpush.msra.mxu0 %v477
      %512 = vmatmul.f32.gmra.mxu0 %v494
      %v513 = vpop.f32.mrf.mxu0
      %v514 = vadd.f32 %v490, %v513
      %515 = vdwg.mxu0
      %516 = vmatpush.msra.mxu0 0.0
      %517 = vmatpush.msra.mxu0 0.0
      %518 = vmatpush.msra.mxu0 0.0
      %519 = vmatpush.msra.mxu0 0.0
      %520 = vmatpush.msra.mxu0 0.0
      %521 = vmatpush.msra.mxu0 0.0
      %522 = vmatpush.msra.mxu0 0.0
      %523 = vmatpush.msra.mxu0 0.0
      %524 = vmatpush.msra.mxu0 0.0
      %525 = vmatpush.msra.mxu0 0.0
      %526 = vmatpush.msra.mxu0 0.0
      %527 = vmatpush.msra.mxu0 0.0
      %528 = vmatpush.msra.mxu0 %v484
      %529 = vmatpush.msra.mxu0 %v482
      %530 = vmatpush.msra.mxu0 %v480
      %531 = vmatpush.msra.mxu0 %v478
      %532 = vmatmul.f32.gmra.mxu0 %v494
      %v533 = vpop.f32.mrf.mxu0
      %v534 = vadd.f32 %v490, %v533
      %535 = vdwg.mxu0
      %v538 = vrot.slane %v534, 4
      %v539 = vsel %vm310, %v514, %v538
      %541 = vst [vmem:[%s262] sm:$0xff] %v539
      %s542 = smul.u32 2, %s21
      %p543 = scmp.lt.s32.totalorder %s20, 1
      %s544 = scalar_select %p543, %s20, 1
      %p545 = scmp.lt.s32.totalorder %s542, 1
      %s546 = scalar_select %p545, %s542, 1
      %s547 = smul.addr %s544, 2
      %s548 = sadd.s32 %s546, %s547
      %s549 = smul.addr %s548, 4
      %s550 = scalar_lea.vmem %s5, %s549
      // Predicated region
      $region41: #{projection_forward.1} parent=39 // pred_check
        %p551 = pneg %p160
      $region42: #{projection_forward.1} parent=39 // pred_check_branch
        %553 = sbr.rel (%p551) target = $region44
      $region43: #{projection_forward.1} parent=39 // pred_region
        %s554 = smul.u32 2, %s21
      $region44: #{projection_forward.1} parent=39 // pred_fallthru
        _
    $region40: #{projection_forward.1} parent=5 // pred_fallthru
      _
    %p555 = scmp.le.s32.totalorder 2, %s11
    // Predicated region
    $region45: #{projection_forward.1} parent=5 // pred_check
      %p556 = pneg %p555
    $region46: #{projection_forward.1} parent=5 // pred_check_branch
      %558 = sbr.rel (%p556) target = $region48
    $region47: #{projection_forward.1} parent=5 // pred_region
      %s559 = ssub.s32 %s11, 2
      // Predicated region
      $region49: #{projection_forward.1} parent=47 // pred_check
        %p560 = pneg %p166
      $region50: #{projection_forward.1} parent=47 // pred_check_branch
        %562 = sbr.rel (%p560) target = $region52
      $region51: #{projection_forward.1} parent=47 // pred_region
        %s563 = smul.u32 2, %s23
        %p564 = scmp.lt.s32.totalorder %s22, 1
        %s565 = scalar_select %p564, %s22, 1
        %p566 = scmp.lt.s32.totalorder %s563, 1
        %s567 = scalar_select %p566, %s563, 1
        %s568 = smul.addr %s565, 2
        %s569 = sadd.s32 %s567, %s568
        %s570 = smul.addr %s569, 4
        %s571 = scalar_lea.vmem %s5, %s570
      $region52: #{projection_forward.1} parent=47 // pred_fallthru
        _
    $region48: #{projection_forward.1} parent=5 // pred_fallthru
      _
  $region6: #{projection_forward.1} parent=0 // loop_footer
    %s15 = sadd.s32 1, %s11
  $region7: #{projection_forward.1} parent=0 // loop_footer_branch
    %10 = sbr.rel target = $region3
  $region8: #{projection_forward.1} parent=0 // loop_exit
    _

</llo_original>
